<compile_context>
chip_gen: v6e
topology: v6e:2x2x1
jax: 0.10.0
libtpu: 0.0.40
codegen_flags: <defaults>
</compile_context>

<pallas_src>
import math
import functools

import jax
import jax.numpy as jnp
from jax.experimental import pallas as pl
from jax.experimental.pallas import tpu as pltpu


def _round_up(x, m):
    return ((x + m - 1) // m) * m


def _pad_cast(a, shape, dtype):
    """Cast / zero-pad `a` to `shape`+`dtype`, skipping work when already OK."""
    if a.dtype != dtype:
        a = a.astype(dtype)
    if tuple(a.shape) == tuple(shape):
        return a
    out = jnp.zeros(shape, dtype)
    return out.at[tuple(slice(0, s) for s in a.shape)].set(a)


def _choose_tn(f_out, tn_max):
    """Output-feature tile: 256-multiples for v6e/v7x MXU, 128 floor, ideally
    covering all of F_out so the adjacency is streamed exactly once."""
    fo_min = _round_up(f_out, 128)
    if fo_min <= 128:
        return 128
    if fo_min <= tn_max:
        return min(_round_up(fo_min, 256), _round_up(tn_max, 128))
    n_j = -(-fo_min // tn_max)
    return min(_round_up(-(-fo_min // n_j), 256), _round_up(tn_max, 128))


# --------------------------- stage 1: support = X @ W ------------------------

def _support_kernel(x_ref, w_ref, o_ref):
    o_ref[...] = jnp.dot(x_ref[...], w_ref[...],
                         preferred_element_type=jnp.float32).astype(o_ref.dtype)


# --------------------- stage 2: out = adj @ support + bias -------------------

def _adj_spmm_kernel(has_bias, *refs):
    if has_bias:
        adj_ref, s_ref, b_ref, o_ref, acc_ref = refs
    else:
        adj_ref, s_ref, o_ref, acc_ref = refs
        b_ref = None

    k = pl.program_id(2)

    @pl.when(k == 0)
    def _init():
        acc_ref[...] = jnp.zeros_like(acc_ref)

    acc_ref[...] += jnp.dot(adj_ref[...], s_ref[...],
                            preferred_element_type=jnp.float32)

    @pl.when(k == pl.num_programs(2) - 1)
    def _finalize():
        res = acc_ref[...]
        if has_bias:
            res = res + b_ref[...]
        o_ref[...] = res.astype(o_ref.dtype)


# ------------------------------------ wrapper --------------------------------

def graph_convolution(x, adj, weight, bias=None, *,
                      compute_dtype=jnp.bfloat16,
                      tm_max=1024, tk_max=1024, tn_max=1024,
                      vmem_budget_bytes=24 << 20):
    """Pallas GCN forward.

    x: [N, F_in], adj: [N, N] (dense), weight: [F_in, F_out],
    bias: [F_out] or None. Returns f32 [N, F_out].
    compute_dtype=jnp.float32 is the full-precision escape hatch.
    """
    N, F_in = x.shape
    F_in_w, F_out = weight.shape
    assert F_in_w == F_in, "weight/input feature mismatch"
    assert adj.shape == (N, N), "adjacency must be [N, N]"

    cdb = jnp.dtype(compute_dtype).itemsize

    # ---- tile sizes ---------------------------------------------------------
    TN = _choose_tn(F_out, tn_max)
    Fo = _round_up(F_out, TN)
    n_j = Fo // TN

    TM = min(tm_max, _round_up(N, 8))      # output / adj row block
    TK = min(tk_max, _round_up(N, 128))    # adj column (reduction) block

    def stage2_vmem(tm, tk, tn):
        return (2 * tm * tk * cdb          # adj, double-buffered
                + 2 * tk * tn * cdb        # support, double-buffered
                + 2 * tm * tn * 4          # f32 output, double-buffered
                + tm * tn * 4              # f32 accumulator scratch
                + 2 * tn * 4)              # bias

    # Keep the stage-2 working set inside a v7x-safe scoped-VMEM budget.
    while stage2_vmem(TM, TK, TN) > vmem_budget_bytes:
        if TK > 256:
            TK //= 2
        elif TM > 256:
            TM //= 2
        elif TN > 256:
            TN //= 2
            Fo = _round_up(F_out, TN)
            n_j = Fo // TN
        else:
            break

    # v7x megacore: keep >=2 iterations over the parallel grid axes when the
    # j axis has collapsed to one block (costs only a second support read on
    # single-TC chips, which is tiny vs. the N^2 adjacency stream).
    if n_j == 1 and N >= 16 and _round_up(N, TM) // TM == 1:
        TM = _round_up(-(-N // 2), 8)

    Nr = _round_up(N, TM)   # padded adj / output rows
    Nc = _round_up(N, TK)   # padded adj cols = support rows (reduction axis)
    n_i, n_k = Nr // TM, Nc // TK

    # ---- inputs: pad/cast only when actually required -----------------------
    x_p = _pad_cast(x, (Nc, F_in), compute_dtype)
    adj_p = _pad_cast(adj, (Nr, Nc), compute_dtype)
    w_p = _pad_cast(weight, (F_in, Fo), compute_dtype)

    # ---- stage 1: support = X @ W (computed exactly once) -------------------
    TMs = math.gcd(Nc, 512)           # divides Nc, (8,128)-friendly
    n_i1 = Nc // TMs
    # TODO(synk): very large F_in (>~4k) would want an F_in reduction axis on
    # this matmul instead of a single (TMs, F_in) x (F_in, TN) block.
    vmem1 = 2 * TMs * F_in * cdb + 2 * F_in * TN * cdb + 2 * TMs * TN * cdb
    support = pl.pallas_call(
        _support_kernel,
        out_shape=jax.ShapeDtypeStruct((Nc, Fo), compute_dtype),
        grid=(n_i1, n_j),
        in_specs=[pl.BlockSpec((TMs, F_in), lambda i, j: (i, 0)),
                  pl.BlockSpec((F_in, TN), lambda i, j: (0, j))],
        out_specs=pl.BlockSpec((TMs, TN), lambda i, j: (i, j)),
        compiler_params=pltpu.CompilerParams(
            dimension_semantics=("parallel", "parallel"),
            vmem_limit_bytes=int(min(max(vmem1 + (4 << 20), 16 << 20), 48 << 20))),
        cost_estimate=pl.CostEstimate(
            flops=2 * Nc * F_in * Fo,
            transcendentals=0,
            bytes_accessed=(Nc * F_in * cdb            # X (block fixed across j)
                            + F_in * Fo * cdb * n_i1   # W re-read per row block
                            + Nc * Fo * cdb)),         # support written once
    )(x_p, w_p)

    # ---- stage 2: out = adj @ support + bias ---------------------------------
    in_specs = [
        pl.BlockSpec((TM, TK), lambda i, j, k: (i, k)),   # adj tile
        pl.BlockSpec((TK, TN), lambda i, j, k: (k, j)),   # support tile
    ]
    args = [adj_p, support]

    has_bias = bias is not None
    if has_bias:
        b_p = _pad_cast(bias.reshape(1, -1), (1, Fo), jnp.float32)
        in_specs.append(pl.BlockSpec((1, TN), lambda i, j, k: (0, j)))
        args.append(b_p)

    vmem2 = stage2_vmem(TM, TK, TN)
    out = pl.pallas_call(
        functools.partial(_adj_spmm_kernel, has_bias),
        out_shape=jax.ShapeDtypeStruct((Nr, Fo), jnp.float32),
        grid=(n_i, n_j, n_k),
        in_specs=in_specs,
        out_specs=pl.BlockSpec((TM, TN), lambda i, j, k: (i, j)),
        scratch_shapes=[pltpu.VMEM((TM, TN), jnp.float32)],
        compiler_params=pltpu.CompilerParams(
            dimension_semantics=("parallel", "parallel", "arbitrary"),
            vmem_limit_bytes=int(min(max(vmem2 + (4 << 20), 16 << 20), 48 << 20))),
        cost_estimate=pl.CostEstimate(
            flops=2 * Nr * Nc * Fo,
            transcendentals=0,
            bytes_accessed=(Nr * Nc * cdb * n_j        # adj, once per j block
                            + Nc * Fo * cdb * n_i      # support, once per i block
                            + Fo * 4 * n_i             # bias
                            + Nr * Fo * 4)),           # f32 output
    )(*args)

    return out[:N, :F_out]


if __name__ == "__main__":
    # --- small, module-consistent shapes: N nodes, in_features -> out_features
    N, in_features, out_features = 8, 16, 32

    key = jax.random.PRNGKey(0)
    k_x, k_adj, k_w, k_b = jax.random.split(key, 4)

    # Deterministic parameter init mirroring reset_parameters():
    #   stdv = 1 / sqrt(out_features); uniform(-stdv, stdv)
    stdv = 1.0 / math.sqrt(out_features)
    weight = jax.random.uniform(k_w, (in_features, out_features),
                                minval=-stdv, maxval=stdv, dtype=jnp.float32)
    bias = jax.random.uniform(k_b, (out_features,),
                              minval=-stdv, maxval=stdv, dtype=jnp.float32)

    x = jax.random.normal(k_x, (N, in_features), dtype=jnp.float32)
    # Dense row-normalized adjacency with self-loops; torch.spmm on dense
    # values is identical to a dense matmul.
    a = (jax.random.uniform(k_adj, (N, N)) > 0.5).astype(jnp.float32)
    a = a + jnp.eye(N, dtype=jnp.float32)
    adj = a / jnp.sum(a, axis=1, keepdims=True)

    out = graph_convolution(x, adj, weight, bias)
    jax.block_until_ready(out)
    ref = adj @ (x @ weight) + bias[None, :]
    assert out.shape == (N, out_features)
    assert jnp.allclose(out, ref, atol=2e-2, rtol=2e-2), \
        float(jnp.max(jnp.abs(out - ref)))

    # bias=None path (separate kernel variant, no zero-bias stream).
    out_nb = graph_convolution(x, adj, weight, None)
    jax.block_until_ready(out_nb)
    ref_nb = adj @ (x @ weight)
    assert jnp.allclose(out_nb, ref_nb, atol=2e-2, rtol=2e-2)

    # f32 escape hatch (no pad, no narrow-dtype rounding): tight tolerance.
    out_f32 = graph_convolution(x, adj, weight, bias, compute_dtype=jnp.float32)
    jax.block_until_ready(out_f32)
    assert jnp.allclose(out_f32, ref, atol=1e-5, rtol=1e-5), \
        float(jnp.max(jnp.abs(out_f32 - ref)))

    # Larger check exercising wide TN (256), the megacore row split (2 i-blocks)
    # and feature padding (F_out=200 -> 256).
    N2, Fi2, Fo2 = 640, 48, 200
    key2 = jax.random.PRNGKey(1)
    k_x2, k_a2, k_w2, k_b2 = jax.random.split(key2, 4)
    stdv2 = 1.0 / math.sqrt(Fo2)
    w2 = jax.random.uniform(k_w2, (Fi2, Fo2), minval=-stdv2, maxval=stdv2,
                            dtype=jnp.float32)
    b2 = jax.random.uniform(k_b2, (Fo2,), minval=-stdv2, maxval=stdv2,
                            dtype=jnp.float32)
    x2 = jax.random.normal(k_x2, (N2, Fi2), dtype=jnp.float32)
    a2 = (jax.random.uniform(k_a2, (N2, N2)) > 0.5).astype(jnp.float32)
    a2 = a2 + jnp.eye(N2, dtype=jnp.float32)
    adj2 = a2 / jnp.sum(a2, axis=1, keepdims=True)

    out2 = graph_convolution(x2, adj2, w2, b2)
    jax.block_until_ready(out2)
    ref2 = adj2 @ (x2 @ w2) + b2[None, :]
    assert out2.shape == (N2, Fo2)
    assert jnp.allclose(out2, ref2, atol=2e-2, rtol=2e-2), \
        float(jnp.max(jnp.abs(out2 - ref2)))

    print("KERNEL_OK")
</pallas_src>

<mosaic_0001>
module attributes {stable_mosaic.version = 11 : i64} {
  func.func @_support_kernel(%arg0: i32, %arg1: i32, %arg2: memref<128x16xbf16, #tpu.memory_space<vmem>>, %arg3: memref<16x128xbf16, #tpu.memory_space<vmem>>, %arg4: memref<128x128xbf16, #tpu.memory_space<vmem>>) attributes {dimension_semantics = [#tpu.dimension_semantics<parallel>, #tpu.dimension_semantics<parallel>], iteration_bounds = array<i64: 1, 1>, scalar_prefetch = 0 : i64, scratch_operands = 0 : i64, tpu.core_type = #tpu.core_type<tc>, window_params = [{transform_indices = @transform_0, window_bounds = array<i64: 128, 16>}, {transform_indices = @transform_1, window_bounds = array<i64: 16, 128>}, {transform_indices = @transform_2, window_bounds = array<i64: 128, 128>}]} {
    %c0 = arith.constant 0 : index
    %c0_0 = arith.constant 0 : index
    %0 = vector.load %arg2[%c0, %c0_0] : memref<128x16xbf16, #tpu.memory_space<vmem>>, vector<128x16xbf16>
    %c0_1 = arith.constant 0 : index
    %c0_2 = arith.constant 0 : index
    %1 = vector.load %arg3[%c0_1, %c0_2] : memref<16x128xbf16, #tpu.memory_space<vmem>>, vector<16x128xbf16>
    %cst = arith.constant dense<0.000000e+00> : vector<128x128xf32>
    %2 = tpu.matmul %0, %1, %cst {dimension_numbers = #tpu.dot_dimension_numbers<[1], [0], [0], [1], [0, 0, 1, 1], [], []>} : vector<128x16xbf16>, vector<16x128xbf16>, vector<128x128xf32> -> vector<128x128xf32>
    %3 = arith.truncf %2 : vector<128x128xf32> to vector<128x128xbf16>
    %c0_3 = arith.constant 0 : index
    %c0_4 = arith.constant 0 : index
    %4 = vector.load %arg4[%c0_3, %c0_4] : memref<128x128xbf16, #tpu.memory_space<vmem>>, vector<128x128xbf16>
    tpu.vector_store %arg4[%c0_3, %c0_4], %3 {strides = array<i32>} : memref<128x128xbf16, #tpu.memory_space<vmem>>, vector<128x128xbf16>,
    return
  }
  func.func @transform_0(%arg0: i32, %arg1: i32) -> (i32, i32) {
    %c0_i32 = arith.constant 0 : i32
    %c0_i32_0 = arith.constant 0 : i32
    return %arg0, %c0_i32 : i32, i32
  }
  func.func @transform_1(%arg0: i32, %arg1: i32) -> (i32, i32) {
    %c0_i32 = arith.constant 0 : i32
    %c0_i32_0 = arith.constant 0 : i32
    return %c0_i32, %arg1 : i32, i32
  }
  func.func @transform_2(%arg0: i32, %arg1: i32) -> (i32, i32) {
    %c0_i32 = arith.constant 0 : i32
    return %arg0, %arg1 : i32, i32
  }
}

</mosaic_0001>

<llo_original>
// kernel: tpu_custom_call.1
$region0: #{tpu_custom_call.1}
  #allocation0 [shape = 'u32[]', space=smem, size = 0x4, offset = 0x4, fixed_abs, tag = 'smem constant byte address 0x4 - core index']
  #allocation1 [shape = 'u32[144,128]{1,0:T(1,128)}', space=vmem, size = 0x12000, scoped, tag = 'internal scratch']
  %s0 = inlined_call_operand.vmem [shape: bf16[128,16], index: 0, kind: input, shape index: {}]
  %s1 = inlined_call_operand.vmem [shape: bf16[16,128], index: 1, kind: input, shape index: {}]
  %s2 = inlined_call_operand.hbm [shape: bf16[128,128], index: 2, kind: output, shape index: {}]
  %s3 = sld [smem:[#allocation0]]
  $region18: #{tpu_custom_call.1} parent=0
    _
  %s5 = ssub.s32 1, %s3
  %s6 = scalar_select 0, %s5, %s3
  $region1: #{tpu_custom_call.1} parent=0
    #allocation2 [shape = 'u8[32768]{0}', space=vmem, size = 0x8000, scoped, tag = 'output window, operand 0, single buffered']
    #allocation3 [shape = 's32[1]{0}', space=sflag, size = 0x4, scoped, tag = 'scoped memory for tpu_custom_call.1']
    %7 = vsyncpa [#allocation3], 0
    // Predicated region
    $region2: #{tpu_custom_call.1} parent=1 // pred_check
      _
    $region3: #{tpu_custom_call.1} parent=1 // pred_check_branch
      %9 = sbr.rel (0) target = $region5
    $region4: #{tpu_custom_call.1} parent=1 // pred_region
      _
    $region5: #{tpu_custom_call.1} parent=1 // pred_fallthru
      _
    // Predicated region
    $region6: #{tpu_custom_call.1} parent=1 // pred_check
      _
    $region7: #{tpu_custom_call.1} parent=1 // pred_check_branch
      %11 = sbr.rel (0) target = $region9
    $region8: #{tpu_custom_call.1} parent=1 // pred_region
      _
    $region9: #{tpu_custom_call.1} parent=1 // pred_fallthru
      _
    %v13 = vld [vmem:[%s0] sm:$0xf]
    %v14 = vld [vmem:[%s0 + $0x4] sm:$0xf]
    %v15 = vld [vmem:[%s0 + $0x8] sm:$0xf]
    %v16 = vld [vmem:[%s0 + $0xc] sm:$0xf]
    %v17 = vld [vmem:[%s0 + $0x10] sm:$0xf]
    %v18 = vld [vmem:[%s0 + $0x14] sm:$0xf]
    %v19 = vld [vmem:[%s0 + $0x18] sm:$0xf]
    %v20 = vld [vmem:[%s0 + $0x1c] sm:$0xf]
    %v21 = vld [vmem:[%s0 + $0x20] sm:$0xf]
    %v22 = vld [vmem:[%s0 + $0x24] sm:$0xf]
    %v23 = vld [vmem:[%s0 + $0x28] sm:$0xf]
    %v24 = vld [vmem:[%s0 + $0x2c] sm:$0xf]
    %v25 = vld [vmem:[%s0 + $0x30] sm:$0xf]
    %v26 = vld [vmem:[%s0 + $0x34] sm:$0xf]
    %v27 = vld [vmem:[%s0 + $0x38] sm:$0xf]
    %v28 = vld [vmem:[%s0 + $0x3c] sm:$0xf]
    %v29 = vld [vmem:[%s1] sm:$0xf]
    %v30 = vld [vmem:[%s1 + $0x4] sm:$0xf]
    %v47 = vunpack.c.l.b16 %v13
    %v48 = vunpack.c.l.b16 %v14
    %v49 = vunpack.c.l.b16 %v15
    %v50 = vunpack.c.l.b16 %v16
    %v51 = vunpack.c.l.b16 %v17
    %v52 = vunpack.c.l.b16 %v18
    %v53 = vunpack.c.l.b16 %v19
    %v54 = vunpack.c.l.b16 %v20
    %v55 = vunpack.c.l.b16 %v21
    %v56 = vunpack.c.l.b16 %v22
    %v57 = vunpack.c.l.b16 %v23
    %v58 = vunpack.c.l.b16 %v24
    %v59 = vunpack.c.l.b16 %v25
    %v60 = vunpack.c.l.b16 %v26
    %v61 = vunpack.c.l.b16 %v27
    %v62 = vunpack.c.l.b16 %v28
    %v63 = vpack.c.b16 %v48, %v47
    %v64 = vpack.c.b16 %v50, %v49
    %v65 = vpack.c.b16 %v52, %v51
    %v66 = vpack.c.b16 %v54, %v53
    %v67 = vpack.c.b16 %v56, %v55
    %v68 = vpack.c.b16 %v58, %v57
    %v69 = vpack.c.b16 %v60, %v59
    %v70 = vpack.c.b16 %v62, %v61
    %v73 = vunpack.c.l.b16 %v29
    %v74 = vunpack.c.l.b16 %v30
    %v75 = vpack.c.b16 %v74, %v73
    %vm77 = vcmask 130048
    %v79 = vsel %vm77, %v63, 0
    %v82 = vsel %vm77, %v64, 0
    %v85 = vsel %vm77, %v65, 0
    %v88 = vsel %vm77, %v66, 0
    %v91 = vsel %vm77, %v67, 0
    %v94 = vsel %vm77, %v68, 0
    %v97 = vsel %vm77, %v69, 0
    %v100 = vsel %vm77, %v70, 0
    %102 = vmatprep.subr.bf16.mxu0 0
    %103 = vmatpush1.bf16.msra.mxu0 0
    %104 = vmatprep.subr.bf16.mxu0 0
    %105 = vmatpush1.bf16.msra.mxu0 0
    %106 = vmatprep.subr.bf16.mxu0 0
    %107 = vmatpush1.bf16.msra.mxu0 0
    %108 = vmatprep.subr.bf16.mxu0 0
    %109 = vmatpush1.bf16.msra.mxu0 0
    %110 = vmatprep.subr.bf16.mxu0 0
    %111 = vmatpush1.bf16.msra.mxu0 0
    %112 = vmatprep.subr.bf16.mxu0 0
    %113 = vmatpush1.bf16.msra.mxu0 0
    %114 = vmatprep.subr.bf16.mxu0 0
    %115 = vmatpush1.bf16.msra.mxu0 0
    %116 = vmatprep.subr.bf16.mxu0 0
    %117 = vmatpush1.bf16.msra.mxu0 %v75
    %118 = vmatprep.subr.bf16.mxu0 0
    %119 = vmatpush2.bf16.msra.mxu0 0
    %120 = vmatprep.subr.bf16.mxu0 0
    %121 = vmatpush2.bf16.msra.mxu0 0
    %122 = vmatprep.subr.bf16.mxu0 0
    %123 = vmatpush2.bf16.msra.mxu0 0
    %124 = vmatprep.subr.bf16.mxu0 0
    %125 = vmatpush2.bf16.msra.mxu0 0
    %126 = vmatprep.subr.bf16.mxu0 0
    %127 = vmatpush2.bf16.msra.mxu0 0
    %128 = vmatprep.subr.bf16.mxu0 0
    %129 = vmatpush2.bf16.msra.mxu0 0
    %130 = vmatprep.subr.bf16.mxu0 0
    %131 = vmatpush2.bf16.msra.mxu0 0
    %132 = vmatprep.subr.bf16.mxu0 0
    %133 = vmatpush2.bf16.msra.mxu0 0
    %134 = vmatprep.mubr.bf16.mxu0 0
    %135 = vmatmul.mubr.bf16.gmra.mxu0 %v79
    %v136 = vpop.f32.mrf.mxu0
    %v137 = vadd.f32 0.0, %v136
    %v138 = vpop.f32.mrf.mxu0
    %v139 = vpop.f32.mrf.mxu0
    %v140 = vadd.f32 0.0, %v139
    %v141 = vpop.f32.mrf.mxu0
    %142 = vmatprep.mubr.bf16.mxu0 0
    %143 = vmatmul.mubr.bf16.gmra.mxu0 %v82
    %v144 = vpop.f32.mrf.mxu0
    %v145 = vadd.f32 0.0, %v144
    %v146 = vpop.f32.mrf.mxu0
    %v147 = vpop.f32.mrf.mxu0
    %v148 = vadd.f32 0.0, %v147
    %v149 = vpop.f32.mrf.mxu0
    %150 = vmatprep.mubr.bf16.mxu0 0
    %151 = vmatmul.mubr.bf16.gmra.mxu0 %v85
    %v152 = vpop.f32.mrf.mxu0
    %v153 = vadd.f32 0.0, %v152
    %v154 = vpop.f32.mrf.mxu0
    %v155 = vpop.f32.mrf.mxu0
    %v156 = vadd.f32 0.0, %v155
    %v157 = vpop.f32.mrf.mxu0
    %158 = vmatprep.mubr.bf16.mxu0 0
    %159 = vmatmul.mubr.bf16.gmra.mxu0 %v88
    %v160 = vpop.f32.mrf.mxu0
    %v161 = vadd.f32 0.0, %v160
    %v162 = vpop.f32.mrf.mxu0
    %v163 = vpop.f32.mrf.mxu0
    %v164 = vadd.f32 0.0, %v163
    %v165 = vpop.f32.mrf.mxu0
    %166 = vmatprep.mubr.bf16.mxu0 0
    %167 = vmatmul.mubr.bf16.gmra.mxu0 %v91
    %v168 = vpop.f32.mrf.mxu0
    %v169 = vadd.f32 0.0, %v168
    %v170 = vpop.f32.mrf.mxu0
    %v171 = vpop.f32.mrf.mxu0
    %v172 = vadd.f32 0.0, %v171
    %v173 = vpop.f32.mrf.mxu0
    %174 = vmatprep.mubr.bf16.mxu0 0
    %175 = vmatmul.mubr.bf16.gmra.mxu0 %v94
    %v176 = vpop.f32.mrf.mxu0
    %v177 = vadd.f32 0.0, %v176
    %v178 = vpop.f32.mrf.mxu0
    %v179 = vpop.f32.mrf.mxu0
    %v180 = vadd.f32 0.0, %v179
    %v181 = vpop.f32.mrf.mxu0
    %182 = vmatprep.mubr.bf16.mxu0 0
    %183 = vmatmul.mubr.bf16.gmra.mxu0 %v97
    %v184 = vpop.f32.mrf.mxu0
    %v185 = vadd.f32 0.0, %v184
    %v186 = vpop.f32.mrf.mxu0
    %v187 = vpop.f32.mrf.mxu0
    %v188 = vadd.f32 0.0, %v187
    %v189 = vpop.f32.mrf.mxu0
    %190 = vmatprep.mubr.bf16.mxu0 0
    %191 = vmatmul.mubr.bf16.gmra.mxu0 %v100
    %v192 = vpop.f32.mrf.mxu0
    %v193 = vadd.f32 0.0, %v192
    %v194 = vpop.f32.mrf.mxu0
    %v195 = vpop.f32.mrf.mxu0
    %v196 = vadd.f32 0.0, %v195
    %v197 = vpop.f32.mrf.mxu0
    %198 = vdwg.mxu0
    %v199 = vpack.c.bf16 %v140, %v137
    %v200 = vpack.c.bf16 %v148, %v145
    %v201 = vpack.c.bf16 %v156, %v153
    %v202 = vpack.c.bf16 %v164, %v161
    %v203 = vpack.c.bf16 %v172, %v169
    %v204 = vpack.c.bf16 %v180, %v177
    %v205 = vpack.c.bf16 %v188, %v185
    %v206 = vpack.c.bf16 %v196, %v193
    %v215 = vunpack.c.l.b16 %v199
    %v216 = vunpack.c.h.b16 %v199
    %v217 = vunpack.c.l.b16 %v200
    %v218 = vunpack.c.h.b16 %v200
    %v219 = vunpack.c.l.b16 %v201
    %v220 = vunpack.c.h.b16 %v201
    %v221 = vunpack.c.l.b16 %v202
    %v222 = vunpack.c.h.b16 %v202
    %v223 = vunpack.c.l.b16 %v203
    %v224 = vunpack.c.h.b16 %v203
    %v225 = vunpack.c.l.b16 %v204
    %v226 = vunpack.c.h.b16 %v204
    %v227 = vunpack.c.l.b16 %v205
    %v228 = vunpack.c.h.b16 %v205
    %v229 = vunpack.c.l.b16 %v206
    %v230 = vunpack.c.h.b16 %v206
    %v231 = vpack.c.b16 %v215, %v215
    %v232 = vpack.c.b16 %v216, %v216
    %v233 = vpack.c.b16 %v217, %v217
    %v234 = vpack.c.b16 %v218, %v218
    %v235 = vpack.c.b16 %v219, %v219
    %v236 = vpack.c.b16 %v220, %v220
    %v237 = vpack.c.b16 %v221, %v221
    %v238 = vpack.c.b16 %v222, %v222
    %v239 = vpack.c.b16 %v223, %v223
    %v240 = vpack.c.b16 %v224, %v224
    %v241 = vpack.c.b16 %v225, %v225
    %v242 = vpack.c.b16 %v226, %v226
    %v243 = vpack.c.b16 %v227, %v227
    %v244 = vpack.c.b16 %v228, %v228
    %v245 = vpack.c.b16 %v229, %v229
    %v246 = vpack.c.b16 %v230, %v230
    %263 = vst [vmem:[#allocation2] sm:$0xf] %v231
    %264 = vst [vmem:[#allocation2 + $0x4] sm:$0xf] %v232
    %265 = vst [vmem:[#allocation2 + $0x8] sm:$0xf] %v233
    %266 = vst [vmem:[#allocation2 + $0xc] sm:$0xf] %v234
    %267 = vst [vmem:[#allocation2 + $0x10] sm:$0xf] %v235
    %268 = vst [vmem:[#allocation2 + $0x14] sm:$0xf] %v236
    %269 = vst [vmem:[#allocation2 + $0x18] sm:$0xf] %v237
    %270 = vst [vmem:[#allocation2 + $0x1c] sm:$0xf] %v238
    %271 = vst [vmem:[#allocation2 + $0x20] sm:$0xf] %v239
    %272 = vst [vmem:[#allocation2 + $0x24] sm:$0xf] %v240
    %273 = vst [vmem:[#allocation2 + $0x28] sm:$0xf] %v241
    %274 = vst [vmem:[#allocation2 + $0x2c] sm:$0xf] %v242
    %275 = vst [vmem:[#allocation2 + $0x30] sm:$0xf] %v243
    %276 = vst [vmem:[#allocation2 + $0x34] sm:$0xf] %v244
    %277 = vst [vmem:[#allocation2 + $0x38] sm:$0xf] %v245
    %278 = vst [vmem:[#allocation2 + $0x3c] sm:$0xf] %v246
    // Predicated region
    $region10: #{tpu_custom_call.1} parent=1 // pred_check
      _
    $region11: #{tpu_custom_call.1} parent=1 // pred_check_branch
      %280 = sbr.rel (0) target = $region13
    $region12: #{tpu_custom_call.1} parent=1 // pred_region
      %s282 = ssub.s32 1024, 1024
      %283 = vsyncadd [#allocation3], %s282
      %s284 = sshll.u32 [#allocation2], 4
      %s285 = int_to_ptr.vmem [resolvable:$true] %s284
      %290 = dma.vmem_to_hbm [thread:$0]  %s285, 1024, %s2, [#allocation3], 64, 64, 4
    $region13: #{tpu_custom_call.1} parent=1 // pred_fallthru
      _
    // Predicated region
    $region14: #{tpu_custom_call.1} parent=1 // pred_check
      _
    $region15: #{tpu_custom_call.1} parent=1 // pred_check_branch
      %292 = sbr.rel (0) target = $region17
    $region16: #{tpu_custom_call.1} parent=1 // pred_region
      %293 = dma.done [#allocation3], 1024
    $region17: #{tpu_custom_call.1} parent=1 // pred_fallthru
      _
    %294 = vsyncpa [#allocation3], 1

</llo_original>
